<compile_context>
chip_gen: v6e
topology: v6e:2x2x1
jax: 0.10.0
libtpu: 0.0.40
codegen_flags: <defaults>
</compile_context>

<pallas_src>
import functools

import jax
import jax.numpy as jnp
import numpy as np
from jax.experimental import pallas as pl
from jax.experimental.pallas import tpu as pltpu

_MIB = 1024 * 1024


# ----------------------------- Pallas kernel --------------------------------
def _tbcnn_kernel(p_ref, a_ref, w_ref, bgb_ref, out_ref, *, n_valid, d_valid):
    p = p_ref[...]                       # (Bblk, Np, Dp)   f32 (padded channels/nodes = 0)
    a = a_ref[...]                       # (Bblk, 2*Np, Np) f32  [A_l ; A_r] per tree
    bgb = bgb_ref[...]                   # (3, Dp)          f32  [bias ; gamma ; beta]

    bblk, npad, dpad = p.shape
    cdt = w_ref.dtype                    # f32 or bf16 (MXU operand dtype for the weight matmuls)

    # eta-weighted left/right child sums, both stacked on the row axis (one batched MXU pass):
    #   (Bblk, 2Np, Np) @ (Bblk, Np, Dp) -> (Bblk, 2Np, Dp).  A kept f32 for precision.
    clr = jnp.einsum('bmn,bnd->bmd', a, p, preferred_element_type=jnp.float32)

    # conv = p @ w_t + cl @ w_l + cr @ w_r as three accumulating dots -> no lane-axis
    # concat / (Bblk, Np, 3*Dp) staging buffer.
    p2 = p.reshape(bblk * npad, dpad).astype(cdt)
    cl2 = clr[:, :npad, :].reshape(bblk * npad, dpad).astype(cdt)
    cr2 = clr[:, npad:, :].reshape(bblk * npad, dpad).astype(cdt)
    conv = jnp.dot(p2, w_ref[0], preferred_element_type=jnp.float32)
    conv = conv + jnp.dot(cl2, w_ref[1], preferred_element_type=jnp.float32)
    conv = conv + jnp.dot(cr2, w_ref[2], preferred_element_type=jnp.float32)
    conv = conv.reshape(bblk, npad, dpad) + bgb[0:1]                # + bias

    h = conv + p                                                    # residual (f32)

    # LayerNorm over the real channels only (padded lanes of h are exactly 0),
    # PyTorch semantics: biased variance, eps = 1e-5.
    mean = jnp.sum(h, axis=-1, keepdims=True) * (1.0 / d_valid)
    diff = h - mean
    if dpad > d_valid:
        lane = jax.lax.broadcasted_iota(jnp.int32, (1, 1, dpad), 2)
        diff = jnp.where(lane < d_valid, diff, 0.0)
    var = jnp.sum(diff * diff, axis=-1, keepdims=True) * (1.0 / d_valid)
    hn = diff * jax.lax.rsqrt(var + 1e-5)
    hn = hn * bgb[1:2] + bgb[2:3]                                   # gamma, beta (padded lanes -> 0)
    hn = jnp.maximum(hn, 0.0)                                       # ReLU (+ dropout = identity, eval)

    if npad > n_valid:
        row = jax.lax.broadcasted_iota(jnp.int32, (1, npad, 1), 1)
        hn = jnp.where(row < n_valid, hn, 0.0)                      # padded nodes can't win the max

    out_ref[...] = jnp.max(hn, axis=1)                              # (Bblk, Dp), lane-dense store


# ------------------------------- JAX glue ------------------------------------
def _tpu_config():
    """Per-generation VMEM limit + TensorCore count (device_kind string heuristics)."""
    try:
        kind = jax.devices()[0].device_kind.lower()
    except Exception:
        kind = ""
    if "v7" in kind:
        # v7x: 64 MiB physical VMEM per TC, 2 TCs per chip.
        return {"vmem_limit": 56 * _MIB, "num_tc": 2}
    if any(tag in kind for tag in ("v2", "v3", "v4", "v5", "v6")):
        # v5e/v6e (and older): 128 MiB physical VMEM, single TC per device.
        return {"vmem_limit": 100 * _MIB, "num_tc": 1}
    # Unknown part: conservative budget.
    return {"vmem_limit": 48 * _MIB, "num_tc": 1}


def _eta_coeffs(children):
    """Replicates eta_t / eta_r / eta_l from the PyTorch module. children: (B,N,C) int32."""
    children = children.astype(jnp.int32)
    B, N, C = children.shape
    f32 = jnp.float32
    eta_t = jnp.concatenate([jnp.ones((N, 1), f32), jnp.zeros((N, C), f32)], axis=1)
    eta_t = jnp.broadcast_to(eta_t[None], (B, N, C + 1))
    num_siblings = jnp.count_nonzero(children, axis=2).astype(f32)[..., None]        # (B,N,1)
    mask = jnp.concatenate([jnp.zeros((B, N, 1), f32),
                            jnp.minimum(children, 1).astype(f32)], axis=2)           # (B,N,C+1)
    child_idx = jnp.arange(-1, C, dtype=f32)[None, None, :] * mask
    singles = jnp.concatenate([jnp.zeros((B, N, 1), f32),
                               jnp.full((B, N, 1), 0.5, f32),
                               jnp.zeros((B, N, C - 1), f32)], axis=2)
    denom = jnp.where(num_siblings == 1.0, 1.0, num_siblings - 1.0)                  # safe div
    eta_r = jnp.where(num_siblings == 1.0, singles, (1.0 - eta_t) * child_idx / denom)
    eta_l = mask * (1.0 - eta_t) * (1.0 - eta_r)
    return eta_t, eta_l, eta_r


def _scatter_matrices(children, n_pad):
    """Dense (B, N, n_pad) matrices so that A @ parent == sum_c eta[c] * lookup[children[...,c]].

    Built with a scatter-add (no (B, N, C, N) one-hot materialization)."""
    B, N, C = children.shape
    _, eta_l, eta_r = _eta_coeffs(children)
    eta_l_c, eta_r_c = eta_l[..., 1:], eta_r[..., 1:]                # (B,N,C) child slots only
    valid = children > 0                                             # index 0 == zero vector
    cols = jnp.where(valid, children, 0)                             # invalid -> col 0 with value 0
    b_idx = jnp.broadcast_to(jnp.arange(B)[:, None, None], (B, N, C))
    n_idx = jnp.broadcast_to(jnp.arange(N)[None, :, None], (B, N, C))
    zeros = jnp.zeros((B, N, n_pad), jnp.float32)
    A_l = zeros.at[b_idx, n_idx, cols].add(jnp.where(valid, eta_l_c, 0.0))
    A_r = zeros.at[b_idx, n_idx, cols].add(jnp.where(valid, eta_r_c, 0.0))
    return A_l, A_r


def tbcnn_ffd_forward(parent_node_embedding, children_index, batch_tree_mask, params,
                      *, use_bf16=True, block_trees=None):
    """params = (w_t, w_l, w_r, bias, ln_gamma, ln_beta); aggr='max-pooling' (mask unused)."""
    w_t, w_l, w_r, bias, gamma, beta = params
    B, N, C = children_index.shape
    D = parent_node_embedding.shape[-1]

    n_pad = ((N + 7) // 8) * 8                     # sublane alignment for the node axis
    d_pad = ((D + 127) // 128) * 128               # lane-dense channel axis

    cfg = _tpu_config()
    vmem_limit, num_tc = cfg["vmem_limit"], cfg["num_tc"]
    cdt = jnp.bfloat16 if use_bf16 else jnp.float32
    w_itemsize = 2 if use_bf16 else 4

    # ---- block_trees from an explicit VMEM byte budget ----
    # Per-tree bytes per step: parent block (double-buffered) + ~8x parent block of
    # in-kernel temporaries (clr, casts, conv/h/diff/hn) + double-buffered A block + out.
    parent_tree = n_pad * d_pad * 4
    a_tree = 2 * n_pad * n_pad * 4
    per_tree_bytes = parent_tree * (2 + 8) + a_tree * 2 + d_pad * 4 * 2
    fixed_bytes = 3 * d_pad * d_pad * w_itemsize * 2 + 3 * d_pad * 4 * 2
    budget = max(per_tree_bytes, vmem_limit // 2 - fixed_bytes)
    vmem_trees = max(1, budget // per_tree_bytes)
    target_rows = 2048                              # ~1K-2K node rows of work per grid step
    if block_trees is None:
        block_trees = max(1, min(B, max(1, target_rows // n_pad), vmem_trees))

    # ---- grid-step count: only split for megacore on 2-TC parts, keep it even there ----
    num_steps = pl.cdiv(B, block_trees)
    if num_tc >= 2 and B > 1:
        num_steps = max(2, num_steps)
        if num_steps % 2:
            num_steps += 1
        block_trees = pl.cdiv(B, num_steps)
    b_pad = num_steps * block_trees

    # ---- pad & pack inputs (jnp.pad, no full-size zeros().at[].set() passes) ----
    parent = parent_node_embedding.reshape(B, N, D).astype(jnp.float32)
    parent_p = jnp.pad(parent, ((0, b_pad - B), (0, n_pad - N), (0, d_pad - D)))

    A_l, A_r = _scatter_matrices(children_index.reshape(B, N, C).astype(jnp.int32), n_pad)
    pads = ((0, b_pad - B), (0, n_pad - N), (0, 0))
    A = jnp.concatenate([jnp.pad(A_l, pads), jnp.pad(A_r, pads)], axis=1)   # (b_pad, 2*n_pad, n_pad)

    w_stack = jnp.stack([w_t, w_l, w_r], axis=0).astype(cdt)                # (3, D, D)
    w_stack = jnp.pad(w_stack, ((0, 0), (0, d_pad - D), (0, d_pad - D)))    # (3, Dp, Dp)
    bgb = jnp.pad(jnp.stack([bias, gamma, beta], axis=0).astype(jnp.float32),
                  ((0, 0), (0, d_pad - D)))                                 # (3, Dp)

    kernel = functools.partial(_tbcnn_kernel, n_valid=N, d_valid=D)
    out = pl.pallas_call(
        kernel,
        out_shape=jax.ShapeDtypeStruct((num_steps, block_trees, d_pad), jnp.float32),
        grid_spec=pltpu.PrefetchScalarGridSpec(
            num_scalar_prefetch=0,
            grid=(num_steps,),
            in_specs=[
                pl.BlockSpec((block_trees, n_pad, d_pad), lambda b: (b, 0, 0)),      # parents
                pl.BlockSpec((block_trees, 2 * n_pad, n_pad), lambda b: (b, 0, 0)),  # [A_l ; A_r]
                pl.BlockSpec((3, d_pad, d_pad), lambda b: (0, 0, 0)),                # [w_t;w_l;w_r]
                pl.BlockSpec((3, d_pad), lambda b: (0, 0)),                          # [bias;gamma;beta]
            ],
            out_specs=pl.BlockSpec((None, block_trees, d_pad), lambda b: (b, 0, 0)),
        ),
        compiler_params=pltpu.CompilerParams(
            dimension_semantics=("parallel",),
            vmem_limit_bytes=int(vmem_limit),
        ),
    )(parent_p, A, w_stack, bgb)
    return out.reshape(b_pad, d_pad)[:B, :D]


# -------------------- pure-JAX reference (mirrors the PyTorch code) ----------
def reference_forward(parent_node_embedding, children_index, batch_tree_mask, params):
    w_t, w_l, w_r, bias, gamma, beta = params
    B, N, C = children_index.shape
    D = parent_node_embedding.shape[-1]
    parent = parent_node_embedding.reshape(B, N, D).astype(jnp.float32)
    # get_children_embedding_from_parent
    lookup = jnp.concatenate([jnp.zeros((B, 1, D), jnp.float32), parent[:, 1:]], axis=1)
    child_emb = jax.vmap(lambda lut, idx: lut[idx])(lookup, children_index)          # (B,N,C,D)
    tree = jnp.concatenate([parent[:, :, None, :], child_emb], axis=2)               # (B,N,C+1,D)
    eta_t, eta_l, eta_r = _eta_coeffs(children_index)
    eta = jnp.stack([eta_t, eta_l, eta_r], axis=-1)                                  # (B,N,C+1,3)
    weights = jnp.stack([w_t, w_l, w_r], axis=0)                                     # (3,D,D)
    result = jnp.einsum('bncd,bnck->bndk', tree, eta)
    conv = jnp.einsum('bndk,kdo->bno', result, weights) + bias
    h = conv + parent
    mean = h.mean(-1, keepdims=True)
    var = ((h - mean) ** 2).mean(-1, keepdims=True)
    hn = (h - mean) / jnp.sqrt(var + 1e-5) * gamma + beta
    hn = jnp.maximum(hn, 0.0)
    return jnp.max(hn, axis=1)                                                       # max-pooling aggr


# ---------------------------------- main --------------------------------------
if __name__ == "__main__":
    B, N, C, D = 4, 16, 3, 32          # stmts, nodes/tree, children/node, channels (in == out)
    key = jax.random.PRNGKey(0)
    k1, k2, k3, k4, k5, k6, k7, k8 = jax.random.split(key, 8)

    parent = jax.random.normal(k1, (B, N, D), jnp.float32)
    children = jax.random.randint(k2, (B, N, C), 0, N).astype(jnp.int32)
    tree_mask = jnp.zeros((B, N), jnp.float32)   # unused by max-pooling aggregation

    # deterministic parameter init (xavier_normal_ for the conv weights, LN affine perturbed)
    std = (2.0 / (D + D)) ** 0.5
    w_t = std * jax.random.normal(k3, (D, D), jnp.float32)
    w_l = std * jax.random.normal(k4, (D, D), jnp.float32)
    w_r = std * jax.random.normal(k5, (D, D), jnp.float32)
    bias = 0.1 * jax.random.normal(k6, (D,), jnp.float32)
    gamma = 1.0 + 0.1 * jax.random.normal(k7, (D,), jnp.float32)
    beta = 0.1 * jax.random.normal(k8, (D,), jnp.float32)
    params = (w_t, w_l, w_r, bias, gamma, beta)

    ref = reference_forward(parent, children, tree_mask, params)

    # f32 MXU operands: bit-tight against the reference
    out = jax.block_until_ready(
        tbcnn_ffd_forward(parent, children, tree_mask, params, use_bf16=False))
    np.testing.assert_allclose(np.asarray(out), np.asarray(ref), rtol=1e-4, atol=1e-4)

    # bf16 MXU operands (default; A / eta stays f32), f32 accumulation + f32 LayerNorm
    out_bf16 = jax.block_until_ready(
        tbcnn_ffd_forward(parent, children, tree_mask, params, use_bf16=True))
    np.testing.assert_allclose(np.asarray(out_bf16), np.asarray(ref), rtol=5e-2, atol=5e-2)

    print("KERNEL_OK")
</pallas_src>

<mosaic_0001>
module attributes {stable_mosaic.version = 11 : i64} {
  func.func @_tbcnn_kernel(%arg0: i32, %arg1: memref<4x16x128xf32, #tpu.memory_space<vmem>>, %arg2: memref<4x32x16xf32, #tpu.memory_space<vmem>>, %arg3: memref<3x128x128xf32, #tpu.memory_space<vmem>>, %arg4: memref<3x128xf32, #tpu.memory_space<vmem>>, %arg5: memref<1x4x128xf32, #tpu.memory_space<vmem>>) attributes {dimension_semantics = [#tpu.dimension_semantics<parallel>], iteration_bounds = array<i64: 1>, scalar_prefetch = 0 : i64, scratch_operands = 0 : i64, tpu.core_type = #tpu.core_type<tc>, window_params = [{transform_indices = @transform_0, window_bounds = array<i64: 4, 16, 128>}, {transform_indices = @transform_1, window_bounds = array<i64: 4, 32, 16>}, {pipeline_mode = #tpu.pipeline_mode<synchronous>, transform_indices = @transform_2, window_bounds = array<i64: 3, 128, 128>}, {pipeline_mode = #tpu.pipeline_mode<synchronous>, transform_indices = @transform_3, window_bounds = array<i64: 3, 128>}, {transform_indices = @transform_4, window_bounds = array<i64: 1, 4, 128>}]} {
    %c0 = arith.constant 0 : index
    %c0_0 = arith.constant 0 : index
    %c0_1 = arith.constant 0 : index
    %0 = vector.load %arg1[%c0, %c0_0, %c0_1] : memref<4x16x128xf32, #tpu.memory_space<vmem>>, vector<4x16x128xf32>
    %c0_2 = arith.constant 0 : index
    %c0_3 = arith.constant 0 : index
    %c0_4 = arith.constant 0 : index
    %1 = vector.load %arg2[%c0_2, %c0_3, %c0_4] : memref<4x32x16xf32, #tpu.memory_space<vmem>>, vector<4x32x16xf32>
    %c0_5 = arith.constant 0 : index
    %c0_6 = arith.constant 0 : index
    %2 = vector.load %arg4[%c0_5, %c0_6] : memref<3x128xf32, #tpu.memory_space<vmem>>, vector<3x128xf32>
    "tpu.trace_start"() <{level = 10 : i32, message = "bmn,bnd->bmd"}> : () -> ()
    %cst = arith.constant dense<0.000000e+00> : vector<4x32x128xf32>
    %3 = tpu.matmul %1, %0, %cst {dimension_numbers = #tpu.dot_dimension_numbers<[2], [1], [1], [2], [0, 0, 0, 1, 1, 2], [0], [0]>} : vector<4x32x16xf32>, vector<4x16x128xf32>, vector<4x32x128xf32> -> vector<4x32x128xf32>
    "tpu.trace_stop"() : () -> ()
    %4 = vector.shape_cast %0 : vector<4x16x128xf32> to vector<64x128xf32>
    %5 = vector.extract_strided_slice %3 {offsets = [0, 0, 0], sizes = [4, 16, 128], strides = [1, 1, 1]} : vector<4x32x128xf32> to vector<4x16x128xf32>
    %6 = vector.shape_cast %5 : vector<4x16x128xf32> to vector<64x128xf32>
    %7 = vector.extract_strided_slice %3 {offsets = [0, 16, 0], sizes = [4, 16, 128], strides = [1, 1, 1]} : vector<4x32x128xf32> to vector<4x16x128xf32>
    %8 = vector.shape_cast %7 : vector<4x16x128xf32> to vector<64x128xf32>
    %c0_7 = arith.constant 0 : index
    %c0_8 = arith.constant 0 : index
    %c0_9 = arith.constant 0 : index
    %9 = vector.load %arg3[%c0_7, %c0_8, %c0_9] : memref<3x128x128xf32, #tpu.memory_space<vmem>>, vector<1x128x128xf32>
    %10 = vector.shape_cast %9 : vector<1x128x128xf32> to vector<128x128xf32>
    %cst_10 = arith.constant dense<0.000000e+00> : vector<64x128xf32>
    %11 = tpu.matmul %4, %10, %cst_10 {dimension_numbers = #tpu.dot_dimension_numbers<[1], [0], [0], [1], [0, 0, 1, 1], [], []>} : vector<64x128xf32>, vector<128x128xf32>, vector<64x128xf32> -> vector<64x128xf32>
    %c1 = arith.constant 1 : index
    %c0_11 = arith.constant 0 : index
    %c0_12 = arith.constant 0 : index
    %12 = vector.load %arg3[%c1, %c0_11, %c0_12] : memref<3x128x128xf32, #tpu.memory_space<vmem>>, vector<1x128x128xf32>
    %13 = vector.shape_cast %12 : vector<1x128x128xf32> to vector<128x128xf32>
    %cst_13 = arith.constant dense<0.000000e+00> : vector<64x128xf32>
    %14 = tpu.matmul %6, %13, %cst_13 {dimension_numbers = #tpu.dot_dimension_numbers<[1], [0], [0], [1], [0, 0, 1, 1], [], []>} : vector<64x128xf32>, vector<128x128xf32>, vector<64x128xf32> -> vector<64x128xf32>
    %15 = arith.addf %11, %14 : vector<64x128xf32>
    %c2 = arith.constant 2 : index
    %c0_14 = arith.constant 0 : index
    %c0_15 = arith.constant 0 : index
    %16 = vector.load %arg3[%c2, %c0_14, %c0_15] : memref<3x128x128xf32, #tpu.memory_space<vmem>>, vector<1x128x128xf32>
    %17 = vector.shape_cast %16 : vector<1x128x128xf32> to vector<128x128xf32>
    %cst_16 = arith.constant dense<0.000000e+00> : vector<64x128xf32>
    %18 = tpu.matmul %8, %17, %cst_16 {dimension_numbers = #tpu.dot_dimension_numbers<[1], [0], [0], [1], [0, 0, 1, 1], [], []>} : vector<64x128xf32>, vector<128x128xf32>, vector<64x128xf32> -> vector<64x128xf32>
    %19 = arith.addf %15, %18 : vector<64x128xf32>
    %20 = vector.shape_cast %19 : vector<64x128xf32> to vector<4x16x128xf32>
    %21 = vector.extract_strided_slice %2 {offsets = [0, 0], sizes = [1, 128], strides = [1, 1]} : vector<3x128xf32> to vector<1x128xf32>
    %22 = vector.shape_cast %21 : vector<1x128xf32> to vector<1x1x128xf32>
    %23 = vector.broadcast %22 : vector<1x1x128xf32> to vector<4x16x128xf32>
    %24 = arith.addf %20, %23 : vector<4x16x128xf32>
    %25 = arith.addf %24, %0 : vector<4x16x128xf32>
    %cst_17 = arith.constant dense<0.000000e+00> : vector<4x16xf32>
    %26 = vector.multi_reduction <add>, %25, %cst_17 [2] : vector<4x16x128xf32> to vector<4x16xf32>
    %27 = vector.shape_cast %26 : vector<4x16xf32> to vector<4x16x1xf32>
    %cst_18 = arith.constant 3.125000e-02 : f32
    %28 = vector.broadcast %cst_18 : f32 to vector<4x16x1xf32>
    %29 = arith.mulf %27, %28 : vector<4x16x1xf32>
    %30 = vector.broadcast %29 : vector<4x16x1xf32> to vector<4x16x128xf32>
    %31 = arith.subf %25, %30 : vector<4x16x128xf32>
    %32 = tpu.iota {dimensions = array<i32: 2>} : vector<1x1x128xi32>
    %c32_i32 = arith.constant 32 : i32
    %33 = vector.broadcast %c32_i32 : i32 to vector<1x1x128xi32>
    %34 = arith.cmpi slt, %32, %33 : vector<1x1x128xi32>
    %cst_19 = arith.constant 0.000000e+00 : f32
    %35 = vector.shape_cast %34 : vector<1x1x128xi1> to vector<1x1x128xi1>
    %36 = vector.broadcast %35 : vector<1x1x128xi1> to vector<4x16x128xi1>
    %37 = vector.broadcast %cst_19 : f32 to vector<4x16x128xf32>
    %38 = arith.select %36, %31, %37 : vector<4x16x128xi1>, vector<4x16x128xf32>
    %39 = arith.mulf %38, %38 : vector<4x16x128xf32>
    %cst_20 = arith.constant dense<0.000000e+00> : vector<4x16xf32>
    %40 = vector.multi_reduction <add>, %39, %cst_20 [2] : vector<4x16x128xf32> to vector<4x16xf32>
    %41 = vector.shape_cast %40 : vector<4x16xf32> to vector<4x16x1xf32>
    %cst_21 = arith.constant 3.125000e-02 : f32
    %42 = vector.broadcast %cst_21 : f32 to vector<4x16x1xf32>
    %43 = arith.mulf %41, %42 : vector<4x16x1xf32>
    %cst_22 = arith.constant 9.99999974E-6 : f32
    %44 = vector.broadcast %cst_22 : f32 to vector<4x16x1xf32>
    %45 = arith.addf %43, %44 : vector<4x16x1xf32>
    %46 = math.rsqrt %45 : vector<4x16x1xf32>
    %47 = vector.broadcast %46 : vector<4x16x1xf32> to vector<4x16x128xf32>
    %48 = arith.mulf %38, %47 : vector<4x16x128xf32>
    %49 = vector.extract_strided_slice %2 {offsets = [1, 0], sizes = [1, 128], strides = [1, 1]} : vector<3x128xf32> to vector<1x128xf32>
    %50 = vector.shape_cast %49 : vector<1x128xf32> to vector<1x1x128xf32>
    %51 = vector.broadcast %50 : vector<1x1x128xf32> to vector<4x16x128xf32>
    %52 = arith.mulf %48, %51 : vector<4x16x128xf32>
    %53 = vector.extract_strided_slice %2 {offsets = [2, 0], sizes = [1, 128], strides = [1, 1]} : vector<3x128xf32> to vector<1x128xf32>
    %54 = vector.shape_cast %53 : vector<1x128xf32> to vector<1x1x128xf32>
    %55 = vector.broadcast %54 : vector<1x1x128xf32> to vector<4x16x128xf32>
    %56 = arith.addf %52, %55 : vector<4x16x128xf32>
    %cst_23 = arith.constant 0.000000e+00 : f32
    %57 = vector.broadcast %cst_23 : f32 to vector<4x16x128xf32>
    %58 = arith.maximumf %56, %57 : vector<4x16x128xf32>
    %cst_24 = arith.constant dense<0xFF800000> : vector<4x128xf32>
    %59 = vector.multi_reduction <maximumf>, %58, %cst_24 [1] : vector<4x16x128xf32> to vector<4x128xf32>
    %c0_25 = arith.constant 0 : index
    %c0_26 = arith.constant 0 : index
    %c0_27 = arith.constant 0 : index
    %60 = vector.load %arg5[%c0_25, %c0_26, %c0_27] : memref<1x4x128xf32, #tpu.memory_space<vmem>>, vector<1x4x128xf32>
    %61 = vector.shape_cast %60 : vector<1x4x128xf32> to vector<4x128xf32>
    %62 = vector.shape_cast %59 : vector<4x128xf32> to vector<1x4x128xf32>
    tpu.vector_store %arg5[%c0_25, %c0_26, %c0_27], %62 {strides = array<i32>} : memref<1x4x128xf32, #tpu.memory_space<vmem>>, vector<1x4x128xf32>,
    return
  }
  func.func @transform_0(%arg0: i32) -> (i32, i32, i32) {
    %c0_i32 = arith.constant 0 : i32
    %c0_i32_0 = arith.constant 0 : i32
    %c0_i32_1 = arith.constant 0 : i32
    return %arg0, %c0_i32, %c0_i32_0 : i32, i32, i32
  }
  func.func @transform_1(%arg0: i32) -> (i32, i32, i32) {
    %c0_i32 = arith.constant 0 : i32
    %c0_i32_0 = arith.constant 0 : i32
    %c0_i32_1 = arith.constant 0 : i32
    return %arg0, %c0_i32, %c0_i32_0 : i32, i32, i32
  }
  func.func @transform_2(%arg0: i32) -> (i32, i32, i32) {
    %c0_i32 = arith.constant 0 : i32
    %c0_i32_0 = arith.constant 0 : i32
    %c0_i32_1 = arith.constant 0 : i32
    %c0_i32_2 = arith.constant 0 : i32
    return %c0_i32, %c0_i32_0, %c0_i32_1 : i32, i32, i32
  }
  func.func @transform_3(%arg0: i32) -> (i32, i32) {
    %c0_i32 = arith.constant 0 : i32
    %c0_i32_0 = arith.constant 0 : i32
    %c0_i32_1 = arith.constant 0 : i32
    return %c0_i32, %c0_i32_0 : i32, i32
  }
  func.func @transform_4(%arg0: i32) -> (i32, i32, i32) {
    %c0_i32 = arith.constant 0 : i32
    %c0_i32_0 = arith.constant 0 : i32
    %c0_i32_1 = arith.constant 0 : i32
    return %arg0, %c0_i32, %c0_i32_0 : i32, i32, i32
  }
}

</mosaic_0001>

<llo_original>
// kernel: tpu_custom_call.1
$region0: #{tpu_custom_call.1}
  #allocation0 [shape = 'u32[]', space=smem, size = 0x4, offset = 0x4, fixed_abs, tag = 'smem constant byte address 0x4 - core index']
  #allocation1 [shape = 'u32[144,128]{1,0:T(1,128)}', space=vmem, size = 0x12000, scoped, tag = 'internal scratch']
  %s0 = inlined_call_operand.vmem [shape: f32[4,16,128], index: 0, kind: input, shape index: {}]
  %s1 = inlined_call_operand.vmem [shape: f32[4,32,16], index: 1, kind: input, shape index: {}]
  %s2 = inlined_call_operand.hbm [shape: f32[3,128,128], index: 2, kind: input, shape index: {}]
  %s3 = inlined_call_operand.vmem [shape: f32[3,128], index: 3, kind: input, shape index: {}]
  %s4 = inlined_call_operand.hbm [shape: f32[1,4,128], index: 4, kind: output, shape index: {}]
  %s5 = sld [smem:[#allocation0]]
  $region30: #{tpu_custom_call.1} parent=0
    _
  %s7 = ssub.s32 1, %s5
  %s8 = scalar_select 0, %s7, %s5
  $region1: #{tpu_custom_call.1} parent=0
    #allocation2 [shape = 'u8[196608]{0}', space=vmem, size = 0x30000, scoped, tag = 'input window, operand 2, single buffered']
    #allocation3 [shape = 's32[1]{0}', space=sflag, size = 0x4, scoped, tag = 'scoped memory for tpu_custom_call.1']
    #allocation4 [shape = 's32[1]{0}', space=sflag, size = 0x4, scoped, tag = 'scoped memory for tpu_custom_call.1']
    #allocation5 [shape = 'u8[2048]{0}', space=vmem, size = 0x800, scoped, tag = 'output window, operand 0, single buffered']
    %9 = vsyncpa [#allocation3], 0
    %10 = vsyncpa [#allocation4], 0
    // Predicated region
    $region2: #{tpu_custom_call.1} parent=1 // pred_check
      _
    $region3: #{tpu_custom_call.1} parent=1 // pred_check_branch
      %12 = sbr.rel (0) target = $region5
    $region4: #{tpu_custom_call.1} parent=1 // pred_region
      _
    $region5: #{tpu_custom_call.1} parent=1 // pred_fallthru
      _
    // Predicated region
    $region6: #{tpu_custom_call.1} parent=1 // pred_check
      _
    $region7: #{tpu_custom_call.1} parent=1 // pred_check_branch
      %14 = sbr.rel (0) target = $region9
    $region8: #{tpu_custom_call.1} parent=1 // pred_region
      _
    $region9: #{tpu_custom_call.1} parent=1 // pred_fallthru
      _
    // Predicated region
    $region10: #{tpu_custom_call.1} parent=1 // pred_check
      _
    $region11: #{tpu_custom_call.1} parent=1 // pred_check_branch
      %16 = sbr.rel (0) target = $region13
    $region12: #{tpu_custom_call.1} parent=1 // pred_region
      %s18 = ssub.s32 6144, 6144
      %19 = vsyncadd [#allocation3], %s18
      %s20 = sshll.u32 [#allocation2], 4
      %s21 = int_to_ptr.vmem [resolvable:$true] %s20
      %26 = dma.hbm_to_vmem [thread:$0]  %s2, 6144, %s21, [#allocation3], 128, 128, 8
    $region13: #{tpu_custom_call.1} parent=1 // pred_fallthru
      _
    // Predicated region
    $region14: #{tpu_custom_call.1} parent=1 // pred_check
      _
    $region15: #{tpu_custom_call.1} parent=1 // pred_check_branch
      %28 = sbr.rel (0) target = $region17
    $region16: #{tpu_custom_call.1} parent=1 // pred_region
      _
    $region17: #{tpu_custom_call.1} parent=1 // pred_fallthru
      _
    // Predicated region
    $region18: #{tpu_custom_call.1} parent=1 // pred_check
      _
    $region19: #{tpu_custom_call.1} parent=1 // pred_check_branch
      %30 = sbr.rel (0) target = $region21
    $region20: #{tpu_custom_call.1} parent=1 // pred_region
      %31 = dma.done [#allocation3], 6144
    $region21: #{tpu_custom_call.1} parent=1 // pred_fallthru
      _
    %v32 = vld [vmem:[%s0] sm:$0xff]
    %v33 = vld [vmem:[%s0 + $0x8] sm:$0xff]
    %v34 = vld [vmem:[%s0 + $0x10] sm:$0xff]
    %v35 = vld [vmem:[%s0 + $0x18] sm:$0xff]
    %v36 = vld [vmem:[%s0 + $0x20] sm:$0xff]
    %v37 = vld [vmem:[%s0 + $0x28] sm:$0xff]
    %v38 = vld [vmem:[%s0 + $0x30] sm:$0xff]
    %v39 = vld [vmem:[%s0 + $0x38] sm:$0xff]
    %v40 = vld [vmem:[%s1] sm:$0xff]
    %v41 = vld [vmem:[%s1 + $0x8] sm:$0xff]
    %v42 = vld [vmem:[%s1 + $0x10] sm:$0xff]
    %v43 = vld [vmem:[%s1 + $0x18] sm:$0xff]
    %v44 = vld [vmem:[%s1 + $0x20] sm:$0xff]
    %v45 = vld [vmem:[%s1 + $0x28] sm:$0xff]
    %v46 = vld [vmem:[%s1 + $0x30] sm:$0xff]
    %v47 = vld [vmem:[%s1 + $0x38] sm:$0xff]
    %v48 = vld [vmem:[%s1 + $0x40] sm:$0xff]
    %v49 = vld [vmem:[%s1 + $0x48] sm:$0xff]
    %v50 = vld [vmem:[%s1 + $0x50] sm:$0xff]
    %v51 = vld [vmem:[%s1 + $0x58] sm:$0xff]
    %v52 = vld [vmem:[%s1 + $0x60] sm:$0xff]
    %v53 = vld [vmem:[%s1 + $0x68] sm:$0xff]
    %v54 = vld [vmem:[%s1 + $0x70] sm:$0xff]
    %v55 = vld [vmem:[%s1 + $0x78] sm:$0xff]
    %v56 = vld [vmem:[%s3] sm:$0x7]
    %vm57 = vcmask 130048
    %v59 = vsel %vm57, %v40, 0
    %v62 = vsel %vm57, %v41, 0
    %v65 = vsel %vm57, %v42, 0
    %v68 = vsel %vm57, %v43, 0
    %70 = vmatprep.subr.mxu0 0.0
    %71 = vmatpush1.msra.mxu0 0.0
    %72 = vmatprep.subr.mxu0 0.0
    %73 = vmatpush1.msra.mxu0 0.0
    %74 = vmatprep.subr.mxu0 0.0
    %75 = vmatpush1.msra.mxu0 0.0
    %76 = vmatprep.subr.mxu0 0.0
    %77 = vmatpush1.msra.mxu0 0.0
    %78 = vmatprep.subr.mxu0 0.0
    %79 = vmatpush1.msra.mxu0 0.0
    %80 = vmatprep.subr.mxu0 0.0
    %81 = vmatpush1.msra.mxu0 0.0
    %82 = vmatprep.subr.mxu0 0.0
    %83 = vmatpush1.msra.mxu0 0.0
    %84 = vmatprep.subr.mxu0 0.0
    %85 = vmatpush1.msra.mxu0 0.0
    %86 = vmatprep.subr.mxu0 0.0
    %87 = vmatpush1.msra.mxu0 0.0
    %88 = vmatprep.subr.mxu0 0.0
    %89 = vmatpush1.msra.mxu0 0.0
    %90 = vmatprep.subr.mxu0 0.0
    %91 = vmatpush1.msra.mxu0 0.0
    %92 = vmatprep.subr.mxu0 0.0
    %93 = vmatpush1.msra.mxu0 0.0
    %94 = vmatprep.subr.mxu0 0.0
    %95 = vmatpush1.msra.mxu0 0.0
    %96 = vmatprep.subr.mxu0 0.0
    %97 = vmatpush1.msra.mxu0 0.0
    %98 = vmatprep.subr.mxu0 0.0
    %99 = vmatpush1.msra.mxu0 %v33
    %100 = vmatprep.subr.mxu0 0.0
    %101 = vmatpush1.msra.mxu0 %v32
    %102 = vmatprep.subr.mxu0 0.0
    %103 = vmatpush2.msra.mxu0 0.0
    %104 = vmatprep.subr.mxu0 0.0
    %105 = vmatpush2.msra.mxu0 0.0
    %106 = vmatprep.subr.mxu0 0.0
    %107 = vmatpush2.msra.mxu0 0.0
    %108 = vmatprep.subr.mxu0 0.0
    %109 = vmatpush2.msra.mxu0 0.0
    %110 = vmatprep.subr.mxu0 0.0
    %111 = vmatpush2.msra.mxu0 0.0
    %112 = vmatprep.subr.mxu0 0.0
    %113 = vmatpush2.msra.mxu0 0.0
    %114 = vmatprep.subr.mxu0 0.0
    %115 = vmatpush2.msra.mxu0 0.0
    %116 = vmatprep.subr.mxu0 0.0
    %117 = vmatpush2.msra.mxu0 0.0
    %118 = vmatprep.subr.mxu0 0.0
    %119 = vmatpush2.msra.mxu0 0.0
    %120 = vmatprep.subr.mxu0 0.0
    %121 = vmatpush2.msra.mxu0 0.0
    %122 = vmatprep.subr.mxu0 0.0
    %123 = vmatpush2.msra.mxu0 0.0
    %124 = vmatprep.subr.mxu0 0.0
    %125 = vmatpush2.msra.mxu0 0.0
    %126 = vmatprep.subr.mxu0 0.0
    %127 = vmatpush2.msra.mxu0 0.0
    %128 = vmatprep.subr.mxu0 0.0
    %129 = vmatpush2.msra.mxu0 0.0
    %130 = vmatprep.subr.mxu0 0.0
    %131 = vmatpush2.msra.mxu0 0.0
    %132 = vmatprep.subr.mxu0 0.0
    %133 = vmatpush2.msra.mxu0 0.0
    %134 = vmatprep.mubr.f32.mxu0 0.0
    %135 = vmatmul.mubr.f32.gmra.mxu0 %v59
    %v136 = vpop.f32.mrf.mxu0
    %v137 = vadd.f32 0.0, %v136
    %v138 = vpop.f32.mrf.mxu0
    %139 = vmatprep.mubr.f32.mxu0 0.0
    %140 = vmatmul.mubr.f32.gmra.mxu0 %v62
    %v141 = vpop.f32.mrf.mxu0
    %v142 = vadd.f32 0.0, %v141
    %v143 = vpop.f32.mrf.mxu0
    %144 = vmatprep.mubr.f32.mxu0 0.0
    %145 = vmatmul.mubr.f32.gmra.mxu0 %v65
    %v146 = vpop.f32.mrf.mxu0
    %v147 = vadd.f32 0.0, %v146
    %v148 = vpop.f32.mrf.mxu0
    %149 = vmatprep.mubr.f32.mxu0 0.0
    %150 = vmatmul.mubr.f32.gmra.mxu0 %v68
    %v151 = vpop.f32.mrf.mxu0
    %v152 = vadd.f32 0.0, %v151
    %v153 = vpop.f32.mrf.mxu0
    %154 = vdwg.mxu0
    %v156 = vsel %vm57, %v44, 0
    %v159 = vsel %vm57, %v45, 0
    %v162 = vsel %vm57, %v46, 0
    %v165 = vsel %vm57, %v47, 0
    %167 = vmatprep.subr.mxu0 0.0
    %168 = vmatpush1.msra.mxu0 0.0
    %169 = vmatprep.subr.mxu0 0.0
    %170 = vmatpush1.msra.mxu0 0.0
    %171 = vmatprep.subr.mxu0 0.0
    %172 = vmatpush1.msra.mxu0 0.0
    %173 = vmatprep.subr.mxu0 0.0
    %174 = vmatpush1.msra.mxu0 0.0
    %175 = vmatprep.subr.mxu0 0.0
    %176 = vmatpush1.msra.mxu0 0.0
    %177 = vmatprep.subr.mxu0 0.0
    %178 = vmatpush1.msra.mxu0 0.0
    %179 = vmatprep.subr.mxu0 0.0
    %180 = vmatpush1.msra.mxu0 0.0
    %181 = vmatprep.subr.mxu0 0.0
    %182 = vmatpush1.msra.mxu0 0.0
    %183 = vmatprep.subr.mxu0 0.0
    %184 = vmatpush1.msra.mxu0 0.0
    %185 = vmatprep.subr.mxu0 0.0
    %186 = vmatpush1.msra.mxu0 0.0
    %187 = vmatprep.subr.mxu0 0.0
    %188 = vmatpush1.msra.mxu0 0.0
    %189 = vmatprep.subr.mxu0 0.0
    %190 = vmatpush1.msra.mxu0 0.0
    %191 = vmatprep.subr.mxu0 0.0
    %192 = vmatpush1.msra.mxu0 0.0
    %193 = vmatprep.subr.mxu0 0.0
    %194 = vmatpush1.msra.mxu0 0.0
    %195 = vmatprep.subr.mxu0 0.0
    %196 = vmatpush1.msra.mxu0 %v35
    %197 = vmatprep.subr.mxu0 0.0
    %198 = vmatpush1.msra.mxu0 %v34
    %199 = vmatprep.subr.mxu0 0.0
    %200 = vmatpush2.msra.mxu0 0.0
    %201 = vmatprep.subr.mxu0 0.0
    %202 = vmatpush2.msra.mxu0 0.0
    %203 = vmatprep.subr.mxu0 0.0
    %204 = vmatpush2.msra.mxu0 0.0
    %205 = vmatprep.subr.mxu0 0.0
    %206 = vmatpush2.msra.mxu0 0.0
    %207 = vmatprep.subr.mxu0 0.0
    %208 = vmatpush2.msra.mxu0 0.0
    %209 = vmatprep.subr.mxu0 0.0
    %210 = vmatpush2.msra.mxu0 0.0
    %211 = vmatprep.subr.mxu0 0.0
    %212 = vmatpush2.msra.mxu0 0.0
    %213 = vmatprep.subr.mxu0 0.0
    %214 = vmatpush2.msra.mxu0 0.0
    %215 = vmatprep.subr.mxu0 0.0
    %216 = vmatpush2.msra.mxu0 0.0
    %217 = vmatprep.subr.mxu0 0.0
    %218 = vmatpush2.msra.mxu0 0.0
    %219 = vmatprep.subr.mxu0 0.0
    %220 = vmatpush2.msra.mxu0 0.0
    %221 = vmatprep.subr.mxu0 0.0
    %222 = vmatpush2.msra.mxu0 0.0
    %223 = vmatprep.subr.mxu0 0.0
    %224 = vmatpush2.msra.mxu0 0.0
    %225 = vmatprep.subr.mxu0 0.0
    %226 = vmatpush2.msra.mxu0 0.0
    %227 = vmatprep.subr.mxu0 0.0
    %228 = vmatpush2.msra.mxu0 0.0
    %229 = vmatprep.subr.mxu0 0.0
    %230 = vmatpush2.msra.mxu0 0.0
    %231 = vmatprep.mubr.f32.mxu0 0.0
    %232 = vmatmul.mubr.f32.gmra.mxu0 %v156
    %v233 = vpop.f32.mrf.mxu0
    %v234 = vadd.f32 0.0, %v233
    %v235 = vpop.f32.mrf.mxu0
    %236 = vmatprep.mubr.f32.mxu0 0.0
    %237 = vmatmul.mubr.f32.gmra.mxu0 %v159
    %v238 = vpop.f32.mrf.mxu0
    %v239 = vadd.f32 0.0, %v238
    %v240 = vpop.f32.mrf.mxu0
    %241 = vmatprep.mubr.f32.mxu0 0.0
    %242 = vmatmul.mubr.f32.gmra.mxu0 %v162
    %v243 = vpop.f32.mrf.mxu0
    %v244 = vadd.f32 0.0, %v243
    %v245 = vpop.f32.mrf.mxu0
    %246 = vmatprep.mubr.f32.mxu0 0.0
    %247 = vmatmul.mubr.f32.gmra.mxu0 %v165
    %v248 = vpop.f32.mrf.mxu0
    %v249 = vadd.f32 0.0, %v248
    %v250 = vpop.f32.mrf.mxu0
    %251 = vdwg.mxu0
    %v253 = vsel %vm57, %v48, 0
    %v256 = vsel %vm57, %v49, 0
    %v259 = vsel %vm57, %v50, 0
    %v262 = vsel %vm57, %v51, 0
    %264 = vmatprep.subr.mxu0 0.0
    %265 = vmatpush1.msra.mxu0 0.0
    %266 = vmatprep.subr.mxu0 0.0
    %267 = vmatpush1.msra.mxu0 0.0
    %268 = vmatprep.subr.mxu0 0.0
    %269 = vmatpush1.msra.mxu0 0.0
    %270 = vmatprep.subr.mxu0 0.0
    %271 = vmatpush1.msra.mxu0 0.0
    %272 = vmatprep.subr.mxu0 0.0
    %273 = vmatpush1.msra.mxu0 0.0
    %274 = vmatprep.subr.mxu0 0.0
    %275 = vmatpush1.msra.mxu0 0.0
    %276 = vmatprep.subr.mxu0 0.0
    %277 = vmatpush1.msra.mxu0 0.0
    %278 = vmatprep.subr.mxu0 0.0
    %279 = vmatpush1.msra.mxu0 0.0
    %280 = vmatprep.subr.mxu0 0.0
    %281 = vmatpush1.msra.mxu0 0.0
    %282 = vmatprep.subr.mxu0 0.0
    %283 = vmatpush1.msra.mxu0 0.0
    %284 = vmatprep.subr.mxu0 0.0
    %285 = vmatpush1.msra.mxu0 0.0
    %286 = vmatprep.subr.mxu0 0.0
    %287 = vmatpush1.msra.mxu0 0.0
    %288 = vmatprep.subr.mxu0 0.0
    %289 = vmatpush1.msra.mxu0 0.0
    %290 = vmatprep.subr.mxu0 0.0
    %291 = vmatpush1.msra.mxu0 0.0
    %292 = vmatprep.subr.mxu0 0.0
    %293 = vmatpush1.msra.mxu0 %v37
    %294 = vmatprep.subr.mxu0 0.0
    %295 = vmatpush1.msra.mxu0 %v36
    %296 = vmatprep.subr.mxu0 0.0
    %297 = vmatpush2.msra.mxu0 0.0
    %298 = vmatprep.subr.mxu0 0.0
    %299 = vmatpush2.msra.mxu0 0.0
    %300 = vmatprep.subr.mxu0 0.0
    %301 = vmatpush2.msra.mxu0 0.0
    %302 = vmatprep.subr.mxu0 0.0
    %303 = vmatpush2.msra.mxu0 0.0
    %304 = vmatprep.subr.mxu0 0.0
    %305 = vmatpush2.msra.mxu0 0.0
    %306 = vmatprep.subr.mxu0 0.0
    %307 = vmatpush2.msra.mxu0 0.0
    %308 = vmatprep.subr.mxu0 0.0
    %309 = vmatpush2.msra.mxu0 0.0
    %310 = vmatprep.subr.mxu0 0.0
    %311 = vmatpush2.msra.mxu0 0.0
    %312 = vmatprep.subr.mxu0 0.0
    %313 = vmatpush2.msra.mxu0 0.0
    %314 = vmatprep.subr.mxu0 0.0
    %315 = vmatpush2.msra.mxu0 0.0
    %316 = vmatprep.subr.mxu0 0.0
    %317 = vmatpush2.msra.mxu0 0.0
    %318 = vmatprep.subr.mxu0 0.0
    %319 = vmatpush2.msra.mxu0 0.0
    %320 = vmatprep.subr.mxu0 0.0
    %321 = vmatpush2.msra.mxu0 0.0
    %322 = vmatprep.subr.mxu0 0.0
    %323 = vmatpush2.msra.mxu0 0.0
    %324 = vmatprep.subr.mxu0 0.0
    %325 = vmatpush2.msra.mxu0 0.0
    %326 = vmatprep.subr.mxu0 0.0
    %327 = vmatpush2.msra.mxu0 0.0
    %328 = vmatprep.mubr.f32.mxu0 0.0
    %329 = vmatmul.mubr.f32.gmra.mxu0 %v253
    %v330 = vpop.f32.mrf.mxu0
    %v331 = vadd.f32 0.0, %v330
    %v332 = vpop.f32.mrf.mxu0
    %333 = vmatprep.mubr.f32.mxu0 0.0
    %334 = vmatmul.mubr.f32.gmra.mxu0 %v256
    %v335 = vpop.f32.mrf.mxu0
    %v336 = vadd.f32 0.0, %v335
    %v337 = vpop.f32.mrf.mxu0
    %338 = vmatprep.mubr.f32.mxu0 0.0
    %339 = vmatmul.mubr.f32.gmra.mxu0 %v259
    %v340 = vpop.f32.mrf.mxu0
    %v341 = vadd.f32 0.0, %v340
    %v342 = vpop.f32.mrf.mxu0
    %343 = vmatprep.mubr.f32.mxu0 0.0
    %344 = vmatmul.mubr.f32.gmra.mxu0 %v262
    %v345 = vpop.f32.mrf.mxu0
    %v346 = vadd.f32 0.0, %v345
    %v347 = vpop.f32.mrf.mxu0
    %348 = vdwg.mxu0
    %v350 = vsel %vm57, %v52, 0
    %v353 = vsel %vm57, %v53, 0
    %v356 = vsel %vm57, %v54, 0
    %v359 = vsel %vm57, %v55, 0
    %361 = vmatprep.subr.mxu0 0.0
    %362 = vmatpush1.msra.mxu0 0.0
    %363 = vmatprep.subr.mxu0 0.0
    %364 = vmatpush1.msra.mxu0 0.0
    %365 = vmatprep.subr.mxu0 0.0
    %366 = vmatpush1.msra.mxu0 0.0
    %367 = vmatprep.subr.mxu0 0.0
    %368 = vmatpush1.msra.mxu0 0.0
    %369 = vmatprep.subr.mxu0 0.0
    %370 = vmatpush1.msra.mxu0 0.0
    %371 = vmatprep.subr.mxu0 0.0
    %372 = vmatpush1.msra.mxu0 0.0
    %373 = vmatprep.subr.mxu0 0.0
    %374 = vmatpush1.msra.mxu0 0.0
    %375 = vmatprep.subr.mxu0 0.0
    %376 = vmatpush1.msra.mxu0 0.0
    %377 = vmatprep.subr.mxu0 0.0
    %378 = vmatpush1.msra.mxu0 0.0
    %379 = vmatprep.subr.mxu0 0.0
    %380 = vmatpush1.msra.mxu0 0.0
    %381 = vmatprep.subr.mxu0 0.0
    %382 = vmatpush1.msra.mxu0 0.0
    %383 = vmatprep.subr.mxu0 0.0
    %384 = vmatpush1.msra.mxu0 0.0
    %385 = vmatprep.subr.mxu0 0.0
    %386 = vmatpush1.msra.mxu0 0.0
    %387 = vmatprep.subr.mxu0 0.0
    %388 = vmatpush1.msra.mxu0 0.0
    %389 = vmatprep.subr.mxu0 0.0
    %390 = vmatpush1.msra.mxu0 %v39
    %391 = vmatprep.subr.mxu0 0.0
    %392 = vmatpush1.msra.mxu0 %v38
    %393 = vmatprep.subr.mxu0 0.0
    %394 = vmatpush2.msra.mxu0 0.0
    %395 = vmatprep.subr.mxu0 0.0
    %396 = vmatpush2.msra.mxu0 0.0
    %397 = vmatprep.subr.mxu0 0.0
    %398 = vmatpush2.msra.mxu0 0.0
    %399 = vmatprep.subr.mxu0 0.0
    %400 = vmatpush2.msra.mxu0 0.0
    %401 = vmatprep.subr.mxu0 0.0
    %402 = vmatpush2.msra.mxu0 0.0
    %403 = vmatprep.subr.mxu0 0.0
    %404 = vmatpush2.msra.mxu0 0.0
    %405 = vmatprep.subr.mxu0 0.0
    %406 = vmatpush2.msra.mxu0 0.0
    %407 = vmatprep.subr.mxu0 0.0
    %408 = vmatpush2.msra.mxu0 0.0
    %409 = vmatprep.subr.mxu0 0.0
    %410 = vmatpush2.msra.mxu0 0.0
    %411 = vmatprep.subr.mxu0 0.0
    %412 = vmatpush2.msra.mxu0 0.0
    %413 = vmatprep.subr.mxu0 0.0
    %414 = vmatpush2.msra.mxu0 0.0
    %415 = vmatprep.subr.mxu0 0.0
    %416 = vmatpush2.msra.mxu0 0.0
    %417 = vmatprep.subr.mxu0 0.0
    %418 = vmatpush2.msra.mxu0 0.0
    %419 = vmatprep.subr.mxu0 0.0
    %420 = vmatpush2.msra.mxu0 0.0
    %421 = vmatprep.subr.mxu0 0.0
    %422 = vmatpush2.msra.mxu0 0.0
    %423 = vmatprep.subr.mxu0 0.0
    %424 = vmatpush2.msra.mxu0 0.0
    %425 = vmatprep.mubr.f32.mxu0 0.0
    %426 = vmatmul.mubr.f32.gmra.mxu0 %v350
    %v427 = vpop.f32.mrf.mxu0
    %v428 = vadd.f32 0.0, %v427
    %v429 = vpop.f32.mrf.mxu0
    %430 = vmatprep.mubr.f32.mxu0 0.0
    %431 = vmatmul.mubr.f32.gmra.mxu0 %v353
    %v432 = vpop.f32.mrf.mxu0
    %v433 = vadd.f32 0.0, %v432
    %v434 = vpop.f32.mrf.mxu0
    %435 = vmatprep.mubr.f32.mxu0 0.0
    %436 = vmatmul.mubr.f32.gmra.mxu0 %v356
    %v437 = vpop.f32.mrf.mxu0
    %v438 = vadd.f32 0.0, %v437
    %v439 = vpop.f32.mrf.mxu0
    %440 = vmatprep.mubr.f32.mxu0 0.0
    %441 = vmatmul.mubr.f32.gmra.mxu0 %v359
    %v442 = vpop.f32.mrf.mxu0
    %v443 = vadd.f32 0.0, %v442
    %v444 = vpop.f32.mrf.mxu0
    %445 = vdwg.mxu0
    %v446 = vld [vmem:[#allocation2] sm:$0xff]
    %v447 = vld [vmem:[#allocation2 + $0x8] sm:$0xff]
    %v448 = vld [vmem:[#allocation2 + $0x10] sm:$0xff]
    %v449 = vld [vmem:[#allocation2 + $0x18] sm:$0xff]
    %v450 = vld [vmem:[#allocation2 + $0x20] sm:$0xff]
    %v451 = vld [vmem:[#allocation2 + $0x28] sm:$0xff]
    %v452 = vld [vmem:[#allocation2 + $0x30] sm:$0xff]
    %v453 = vld [vmem:[#allocation2 + $0x38] sm:$0xff]
    %v454 = vld [vmem:[#allocation2 + $0x40] sm:$0xff]
    %v455 = vld [vmem:[#allocation2 + $0x48] sm:$0xff]
    %v456 = vld [vmem:[#allocation2 + $0x50] sm:$0xff]
    %v457 = vld [vmem:[#allocation2 + $0x58] sm:$0xff]
    %v458 = vld [vmem:[#allocation2 + $0x60] sm:$0xff]
    %v459 = vld [vmem:[#allocation2 + $0x68] sm:$0xff]
    %v460 = vld [vmem:[#allocation2 + $0x70] sm:$0xff]
    %v461 = vld [vmem:[#allocation2 + $0x78] sm:$0xff]
    %s462 = scalar_lea.vmem [#allocation2], 128
    %v463 = vld [vmem:[%s462] sm:$0xff]
    %v464 = vld [vmem:[%s462 + $0x8] sm:$0xff]
    %v465 = vld [vmem:[%s462 + $0x10] sm:$0xff]
    %v466 = vld [vmem:[%s462 + $0x18] sm:$0xff]
    %v467 = vld [vmem:[%s462 + $0x20] sm:$0xff]
    %v468 = vld [vmem:[%s462 + $0x28] sm:$0xff]
    %v469 = vld [vmem:[%s462 + $0x30] sm:$0xff]
    %v470 = vld [vmem:[%s462 + $0x38] sm:$0xff]
    %v471 = vld [vmem:[%s462 + $0x40] sm:$0xff]
    %v472 = vld [vmem:[%s462 + $0x48] sm:$0xff]
    %v473 = vld [vmem:[%s462 + $0x50] sm:$0xff]
    %v474 = vld [vmem:[%s462 + $0x58] sm:$0xff]
    %v475 = vld [vmem:[%s462 + $0x60] sm:$0xff]
    %v476 = vld [vmem:[%s462 + $0x68] sm:$0xff]
    %v477 = vld [vmem:[%s462 + $0x70] sm:$0xff]
    %v478 = vld [vmem:[%s462 + $0x78] sm:$0xff]
    %479 = vmatprep.subr.mxu0 0.0
    %480 = vmatpush1.msra.mxu0 %v478
    %481 = vmatprep.subr.mxu0 0.0
    %482 = vmatpush1.msra.mxu0 %v477
    %483 = vmatprep.subr.mxu0 0.0
    %484 = vmatpush1.msra.mxu0 %v476
    %485 = vmatprep.subr.mxu0 0.0
    %486 = vmatpush1.msra.mxu0 %v475
    %487 = vmatprep.subr.mxu0 0.0
    %488 = vmatpush1.msra.mxu0 %v474
    %489 = vmatprep.subr.mxu0 0.0
    %490 = vmatpush1.msra.mxu0 %v473
    %491 = vmatprep.subr.mxu0 0.0
    %492 = vmatpush1.msra.mxu0 %v472
    %493 = vmatprep.subr.mxu0 0.0
    %494 = vmatpush1.msra.mxu0 %v471
    %495 = vmatprep.subr.mxu0 0.0
    %496 = vmatpush1.msra.mxu0 %v470
    %497 = vmatprep.subr.mxu0 0.0
    %498 = vmatpush1.msra.mxu0 %v469
    %499 = vmatprep.subr.mxu0 0.0
    %500 = vmatpush1.msra.mxu0 %v468
    %501 = vmatprep.subr.mxu0 0.0
    %502 = vmatpush1.msra.mxu0 %v467
    %503 = vmatprep.subr.mxu0 0.0
    %504 = vmatpush1.msra.mxu0 %v466
    %505 = vmatprep.subr.mxu0 0.0
    %506 = vmatpush1.msra.mxu0 %v465
    %507 = vmatprep.subr.mxu0 0.0
    %508 = vmatpush1.msra.mxu0 %v464
    %509 = vmatprep.subr.mxu0 0.0
    %510 = vmatpush1.msra.mxu0 %v463
    %511 = vmatprep.subr.mxu0 0.0
    %512 = vmatpush2.msra.mxu0 0.0
    %513 = vmatprep.subr.mxu0 0.0
    %514 = vmatpush2.msra.mxu0 0.0
    %515 = vmatprep.subr.mxu0 0.0
    %516 = vmatpush2.msra.mxu0 0.0
    %517 = vmatprep.subr.mxu0 0.0
    %518 = vmatpush2.msra.mxu0 0.0
    %519 = vmatprep.subr.mxu0 0.0
    %520 = vmatpush2.msra.mxu0 0.0
    %521 = vmatprep.subr.mxu0 0.0
    %522 = vmatpush2.msra.mxu0 0.0
    %523 = vmatprep.subr.mxu0 0.0
    %524 = vmatpush2.msra.mxu0 0.0
    %525 = vmatprep.subr.mxu0 0.0
    %526 = vmatpush2.msra.mxu0 0.0
    %527 = vmatprep.subr.mxu0 0.0
    %528 = vmatpush2.msra.mxu0 0.0
    %529 = vmatprep.subr.mxu0 0.0
    %530 = vmatpush2.msra.mxu0 0.0
    %531 = vmatprep.subr.mxu0 0.0
    %532 = vmatpush2.msra.mxu0 0.0
    %533 = vmatprep.subr.mxu0 0.0
    %534 = vmatpush2.msra.mxu0 0.0
    %535 = vmatprep.subr.mxu0 0.0
    %536 = vmatpush2.msra.mxu0 0.0
    %537 = vmatprep.subr.mxu0 0.0
    %538 = vmatpush2.msra.mxu0 0.0
    %539 = vmatprep.subr.mxu0 0.0
    %540 = vmatpush2.msra.mxu0 0.0
    %541 = vmatprep.subr.mxu0 0.0
    %542 = vmatpush2.msra.mxu0 0.0
    %543 = vmatprep.mubr.f32.mxu0 0.0
    %544 = vmatmul.mubr.f32.gmra.mxu0 %v137
    %v545 = vpop.f32.mrf.mxu0
    %v546 = vadd.f32 0.0, %v545
    %v547 = vpop.f32.mrf.mxu0
    %548 = vmatprep.mubr.f32.mxu0 0.0
    %549 = vmatmul.mubr.f32.gmra.mxu0 %v142
    %v550 = vpop.f32.mrf.mxu0
    %v551 = vadd.f32 0.0, %v550
    %v552 = vpop.f32.mrf.mxu0
    %553 = vmatprep.mubr.f32.mxu0 0.0
    %554 = vmatmul.mubr.f32.gmra.mxu0 %v234
    %v555 = vpop.f32.mrf.mxu0
    %v556 = vadd.f32 0.0, %v555
    %v557 = vpop.f32.mrf.mxu0
    %558 = vmatprep.mubr.f32.mxu0 0.0
    %559 = vmatmul.mubr.f32.gmra.mxu0 %v239
    %v560 = vpop.f32.mrf.mxu0
    %v561 = vadd.f32 0.0, %v560
    %v562 = vpop.f32.mrf.mxu0
    %563 = vmatprep.mubr.f32.mxu0 0.0
    %564 = vmatmul.mubr.f32.gmra.mxu0 %v331
    %v565 = vpop.f32.mrf.mxu0
    %v566 = vadd.f32 0.0, %v565
    %v567 = vpop.f32.mrf.mxu0
    %568 = vmatprep.mubr.f32.mxu0 0.0
    %569 = vmatmul.mubr.f32.gmra.mxu0 %v336
    %v570 = vpop.f32.mrf.mxu0
    %v571 = vadd.f32 0.0, %v570
    %v572 = vpop.f32.mrf.mxu0
    %573 = vmatprep.mubr.f32.mxu0 0.0
    %574 = vmatmul.mubr.f32.gmra.mxu0 %v428
    %v575 = vpop.f32.mrf.mxu0
    %v576 = vadd.f32 0.0, %v575
    %v577 = vpop.f32.mrf.mxu0
    %578 = vmatprep.mubr.f32.mxu0 0.0
    %579 = vmatmul.mubr.f32.gmra.mxu0 %v433
    %v580 = vpop.f32.mrf.mxu0
    %v581 = vadd.f32 0.0, %v580
    %v582 = vpop.f32.mrf.mxu0
    %583 = vdwg.mxu0
    %584 = vmatprep.subr.mxu0 0.0
    %585 = vmatpush1.msra.mxu0 %v461
    %586 = vmatprep.subr.mxu0 0.0
    %587 = vmatpush1.msra.mxu0 %v460
    %588 = vmatprep.subr.mxu0 0.0
    %589 = vmatpush1.msra.mxu0 %v459
    %590 = vmatprep.subr.mxu0 0.0
    %591 = vmatpush1.msra.mxu0 %v458
    %592 = vmatprep.subr.mxu0 0.0
    %593 = vmatpush1.msra.mxu0 %v457
    %594 = vmatprep.subr.mxu0 0.0
    %595 = vmatpush1.msra.mxu0 %v456
    %596 = vmatprep.subr.mxu0 0.0
    %597 = vmatpush1.msra.mxu0 %v455
    %598 = vmatprep.subr.mxu0 0.0
    %599 = vmatpush1.msra.mxu0 %v454
    %600 = vmatprep.subr.mxu0 0.0
    %601 = vmatpush1.msra.mxu0 %v453
    %602 = vmatprep.subr.mxu0 0.0
    %603 = vmatpush1.msra.mxu0 %v452
    %604 = vmatprep.subr.mxu0 0.0
    %605 = vmatpush1.msra.mxu0 %v451
    %606 = vmatprep.subr.mxu0 0.0
    %607 = vmatpush1.msra.mxu0 %v450
    %608 = vmatprep.subr.mxu0 0.0
    %609 = vmatpush1.msra.mxu0 %v449
    %610 = vmatprep.subr.mxu0 0.0
    %611 = vmatpush1.msra.mxu0 %v448
    %612 = vmatprep.subr.mxu0 0.0
    %613 = vmatpush1.msra.mxu0 %v447
    %614 = vmatprep.subr.mxu0 0.0
    %615 = vmatpush1.msra.mxu0 %v446
    %616 = vmatprep.subr.mxu0 0.0
    %617 = vmatpush2.msra.mxu0 0.0
    %618 = vmatprep.subr.mxu0 0.0
    %619 = vmatpush2.msra.mxu0 0.0
    %620 = vmatprep.subr.mxu0 0.0
    %621 = vmatpush2.msra.mxu0 0.0
    %622 = vmatprep.subr.mxu0 0.0
    %623 = vmatpush2.msra.mxu0 0.0
    %624 = vmatprep.subr.mxu0 0.0
    %625 = vmatpush2.msra.mxu0 0.0
    %626 = vmatprep.subr.mxu0 0.0
    %627 = vmatpush2.msra.mxu0 0.0
    %628 = vmatprep.subr.mxu0 0.0
    %629 = vmatpush2.msra.mxu0 0.0
    %630 = vmatprep.subr.mxu0 0.0
    %631 = vmatpush2.msra.mxu0 0.0
    %632 = vmatprep.subr.mxu0 0.0
    %633 = vmatpush2.msra.mxu0 0.0
    %634 = vmatprep.subr.mxu0 0.0
    %635 = vmatpush2.msra.mxu0 0.0
    %636 = vmatprep.subr.mxu0 0.0
    %637 = vmatpush2.msra.mxu0 0.0
    %638 = vmatprep.subr.mxu0 0.0
    %639 = vmatpush2.msra.mxu0 0.0
    %640 = vmatprep.subr.mxu0 0.0
    %641 = vmatpush2.msra.mxu0 0.0
    %642 = vmatprep.subr.mxu0 0.0
    %643 = vmatpush2.msra.mxu0 0.0
    %644 = vmatprep.subr.mxu0 0.0
    %645 = vmatpush2.msra.mxu0 0.0
    %646 = vmatprep.subr.mxu0 0.0
    %647 = vmatpush2.msra.mxu0 0.0
    %648 = vmatprep.mubr.f32.mxu0 0.0
    %649 = vmatmul.mubr.f32.gmra.mxu0 %v32
    %v650 = vpop.f32.mrf.mxu0
    %v651 = vadd.f32 %v546, %v650
    %v652 = vpop.f32.mrf.mxu0
    %653 = vmatprep.mubr.f32.mxu0 0.0
    %654 = vmatmul.mubr.f32.gmra.mxu0 %v33
    %v655 = vpop.f32.mrf.mxu0
    %v656 = vadd.f32 %v551, %v655
    %v657 = vpop.f32.mrf.mxu0
    %658 = vmatprep.mubr.f32.mxu0 0.0
    %659 = vmatmul.mubr.f32.gmra.mxu0 %v34
    %v660 = vpop.f32.mrf.mxu0
    %v661 = vadd.f32 %v556, %v660
    %v662 = vpop.f32.mrf.mxu0
    %663 = vmatprep.mubr.f32.mxu0 0.0
    %664 = vmatmul.mubr.f32.gmra.mxu0 %v35
    %v665 = vpop.f32.mrf.mxu0
    %v666 = vadd.f32 %v561, %v665
    %v667 = vpop.f32.mrf.mxu0
    %668 = vmatprep.mubr.f32.mxu0 0.0
    %669 = vmatmul.mubr.f32.gmra.mxu0 %v36
    %v670 = vpop.f32.mrf.mxu0
    %v671 = vadd.f32 %v566, %v670
    %v672 = vpop.f32.mrf.mxu0
    %673 = vmatprep.mubr.f32.mxu0 0.0
    %674 = vmatmul.mubr.f32.gmra.mxu0 %v37
    %v675 = vpop.f32.mrf.mxu0
    %v676 = vadd.f32 %v571, %v675
    %v677 = vpop.f32.mrf.mxu0
    %678 = vmatprep.mubr.f32.mxu0 0.0
    %679 = vmatmul.mubr.f32.gmra.mxu0 %v38
    %v680 = vpop.f32.mrf.mxu0
    %v681 = vadd.f32 %v576, %v680
    %v682 = vpop.f32.mrf.mxu0
    %683 = vmatprep.mubr.f32.mxu0 0.0
    %684 = vmatmul.mubr.f32.gmra.mxu0 %v39
    %v685 = vpop.f32.mrf.mxu0
    %v686 = vadd.f32 %v581, %v685
    %v687 = vpop.f32.mrf.mxu0
    %688 = vdwg.mxu0
    %s689 = scalar_lea.vmem [#allocation2], 256
    %v690 = vld [vmem:[%s689] sm:$0xff]
    %v691 = vld [vmem:[%s689 + $0x8] sm:$0xff]
    %v692 = vld [vmem:[%s689 + $0x10] sm:$0xff]
    %v693 = vld [vmem:[%s689 + $0x18] sm:$0xff]
    %v694 = vld [vmem:[%s689 + $0x20] sm:$0xff]
    %v695 = vld [vmem:[%s689 + $0x28] sm:$0xff]
    %v696 = vld [vmem:[%s689 + $0x30] sm:$0xff]
    %v697 = vld [vmem:[%s689 + $0x38] sm:$0xff]
    %v698 = vld [vmem:[%s689 + $0x40] sm:$0xff]
    %v699 = vld [vmem:[%s689 + $0x48] sm:$0xff]
    %v700 = vld [vmem:[%s689 + $0x50] sm:$0xff]
    %v701 = vld [vmem:[%s689 + $0x58] sm:$0xff]
    %v702 = vld [vmem:[%s689 + $0x60] sm:$0xff]
    %v703 = vld [vmem:[%s689 + $0x68] sm:$0xff]
    %v704 = vld [vmem:[%s689 + $0x70] sm:$0xff]
    %v705 = vld [vmem:[%s689 + $0x78] sm:$0xff]
    %706 = vmatprep.subr.mxu0 0.0
    %707 = vmatpush1.msra.mxu0 %v705
    %708 = vmatprep.subr.mxu0 0.0
    %709 = vmatpush1.msra.mxu0 %v704
    %710 = vmatprep.subr.mxu0 0.0
    %711 = vmatpush1.msra.mxu0 %v703
    %712 = vmatprep.subr.mxu0 0.0
    %713 = vmatpush1.msra.mxu0 %v702
    %714 = vmatprep.subr.mxu0 0.0
    %715 = vmatpush1.msra.mxu0 %v701
    %716 = vmatprep.subr.mxu0 0.0
    %717 = vmatpush1.msra.mxu0 %v700
    %718 = vmatprep.subr.mxu0 0.0
    %719 = vmatpush1.msra.mxu0 %v699
    %720 = vmatprep.subr.mxu0 0.0
    %721 = vmatpush1.msra.mxu0 %v698
    %722 = vmatprep.subr.mxu0 0.0
    %723 = vmatpush1.msra.mxu0 %v697
    %724 = vmatprep.subr.mxu0 0.0
    %725 = vmatpush1.msra.mxu0 %v696
    %726 = vmatprep.subr.mxu0 0.0
    %727 = vmatpush1.msra.mxu0 %v695
    %728 = vmatprep.subr.mxu0 0.0
    %729 = vmatpush1.msra.mxu0 %v694
    %730 = vmatprep.subr.mxu0 0.0
    %731 = vmatpush1.msra.mxu0 %v693
    %732 = vmatprep.subr.mxu0 0.0
    %733 = vmatpush1.msra.mxu0 %v692
    %734 = vmatprep.subr.mxu0 0.0
    %735 = vmatpush1.msra.mxu0 %v691
    %736 = vmatprep.subr.mxu0 0.0
    %737 = vmatpush1.msra.mxu0 %v690
    %738 = vmatprep.subr.mxu0 0.0
    %739 = vmatpush2.msra.mxu0 0.0
    %740 = vmatprep.subr.mxu0 0.0
    %741 = vmatpush2.msra.mxu0 0.0
    %742 = vmatprep.subr.mxu0 0.0
    %743 = vmatpush2.msra.mxu0 0.0
    %744 = vmatprep.subr.mxu0 0.0
    %745 = vmatpush2.msra.mxu0 0.0
    %746 = vmatprep.subr.mxu0 0.0
    %747 = vmatpush2.msra.mxu0 0.0
    %748 = vmatprep.subr.mxu0 0.0
    %749 = vmatpush2.msra.mxu0 0.0
    %750 = vmatprep.subr.mxu0 0.0
    %751 = vmatpush2.msra.mxu0 0.0
    %752 = vmatprep.subr.mxu0 0.0
    %753 = vmatpush2.msra.mxu0 0.0
    %754 = vmatprep.subr.mxu0 0.0
    %755 = vmatpush2.msra.mxu0 0.0
    %756 = vmatprep.subr.mxu0 0.0
    %757 = vmatpush2.msra.mxu0 0.0
    %758 = vmatprep.subr.mxu0 0.0
    %759 = vmatpush2.msra.mxu0 0.0
    %760 = vmatprep.subr.mxu0 0.0
    %761 = vmatpush2.msra.mxu0 0.0
    %762 = vmatprep.subr.mxu0 0.0
    %763 = vmatpush2.msra.mxu0 0.0
    %764 = vmatprep.subr.mxu0 0.0
    %765 = vmatpush2.msra.mxu0 0.0
    %766 = vmatprep.subr.mxu0 0.0
    %767 = vmatpush2.msra.mxu0 0.0
    %768 = vmatprep.subr.mxu0 0.0
    %769 = vmatpush2.msra.mxu0 0.0
    %770 = vmatprep.mubr.f32.mxu0 0.0
    %771 = vmatmul.mubr.f32.gmra.mxu0 %v147
    %v772 = vpop.f32.mrf.mxu0
    %v773 = vadd.f32 0.0, %v772
    %v774 = vpop.f32.mrf.mxu0
    %775 = vmatprep.mubr.f32.mxu0 0.0
    %776 = vmatmul.mubr.f32.gmra.mxu0 %v152
    %v777 = vpop.f32.mrf.mxu0
    %v778 = vadd.f32 0.0, %v777
    %v779 = vpop.f32.mrf.mxu0
    %780 = vmatprep.mubr.f32.mxu0 0.0
    %781 = vmatmul.mubr.f32.gmra.mxu0 %v244
    %v782 = vpop.f32.mrf.mxu0
    %v783 = vadd.f32 0.0, %v782
    %v784 = vpop.f32.mrf.mxu0
    %785 = vmatprep.mubr.f32.mxu0 0.0
    %786 = vmatmul.mubr.f32.gmra.mxu0 %v249
    %v787 = vpop.f32.mrf.mxu0
    %v788 = vadd.f32 0.0, %v787
    %v789 = vpop.f32.mrf.mxu0
    %790 = vmatprep.mubr.f32.mxu0 0.0
    %791 = vmatmul.mubr.f32.gmra.mxu0 %v341
    %v792 = vpop.f32.mrf.mxu0
    %v793 = vadd.f32 0.0, %v792
    %v794 = vpop.f32.mrf.mxu0
    %795 = vmatprep.mubr.f32.mxu0 0.0
    %796 = vmatmul.mubr.f32.gmra.mxu0 %v346
    %v797 = vpop.f32.mrf.mxu0
    %v798 = vadd.f32 0.0, %v797
    %v799 = vpop.f32.mrf.mxu0
    %800 = vmatprep.mubr.f32.mxu0 0.0
    %801 = vmatmul.mubr.f32.gmra.mxu0 %v438
    %v802 = vpop.f32.mrf.mxu0
    %v803 = vadd.f32 0.0, %v802
    %v804 = vpop.f32.mrf.mxu0
    %805 = vmatprep.mubr.f32.mxu0 0.0
    %806 = vmatmul.mubr.f32.gmra.mxu0 %v443
    %v807 = vpop.f32.mrf.mxu0
    %v808 = vadd.f32 0.0, %v807
    %v809 = vpop.f32.mrf.mxu0
    %810 = vdwg.mxu0
    %v811 = vadd.f32 %v651, %v773
    %v812 = vadd.f32 %v656, %v778
    %v813 = vadd.f32 %v661, %v783
    %v814 = vadd.f32 %v666, %v788
    %v815 = vadd.f32 %v671, %v793
    %v816 = vadd.f32 %v676, %v798
    %v817 = vadd.f32 %v681, %v803
    %v818 = vadd.f32 %v686, %v808
    %v819 = vlaneseq
    %v820 = vshrl.u32 %v819, 7
    %v821 = vsub.s32 0, %v820
    %v822 = vrot.slane %v56, %v821
    %v823 = vadd.f32 %v811, %v822
    %v824 = vadd.f32 %v812, %v822
    %v825 = vadd.f32 %v813, %v822
    %v826 = vadd.f32 %v814, %v822
    %v827 = vadd.f32 %v815, %v822
    %v828 = vadd.f32 %v816, %v822
    %v829 = vadd.f32 %v817, %v822
    %v830 = vadd.f32 %v818, %v822
    %v831 = vadd.f32 %v823, %v32
    %v832 = vadd.f32 %v824, %v33
    %v833 = vadd.f32 %v825, %v34
    %v834 = vadd.f32 %v826, %v35
    %v835 = vadd.f32 %v827, %v36
    %v836 = vadd.f32 %v828, %v37
    %v837 = vadd.f32 %v829, %v38
    %v838 = vadd.f32 %v830, %v39
    %839 = vadd.xlane.f32.xlu0 %v831
    %v840 = vpop.xlane.xlu0 %839
    %841 = vadd.xlane.f32.xlu0 %v832
    %v842 = vpop.xlane.xlu0 %841
    %843 = vadd.xlane.f32.xlu0 %v833
    %v844 = vpop.xlane.xlu0 %843
    %845 = vadd.xlane.f32.xlu0 %v834
    %v846 = vpop.xlane.xlu0 %845
    %847 = vadd.xlane.f32.xlu0 %v835
    %v848 = vpop.xlane.xlu0 %847
    %849 = vadd.xlane.f32.xlu0 %v836
    %v850 = vpop.xlane.xlu0 %849
    %851 = vadd.xlane.f32.xlu0 %v837
    %v852 = vpop.xlane.xlu0 %851
    %853 = vadd.xlane.f32.xlu0 %v838
    %v854 = vpop.xlane.xlu0 %853
    %v855 = vmul.f32 %v840, 0.03125
    %v856 = vmul.f32 %v842, 0.03125
    %v857 = vmul.f32 %v844, 0.03125
    %v858 = vmul.f32 %v846, 0.03125
    %v859 = vmul.f32 %v848, 0.03125
    %v860 = vmul.f32 %v850, 0.03125
    %v861 = vmul.f32 %v852, 0.03125
    %v862 = vmul.f32 %v854, 0.03125
    %v863 = vsub.f32 %v831, %v855
    %v864 = vsub.f32 %v832, %v856
    %v865 = vsub.f32 %v833, %v857
    %v866 = vsub.f32 %v834, %v858
    %v867 = vsub.f32 %v835, %v859
    %v868 = vsub.f32 %v836, %v860
    %v869 = vsub.f32 %v837, %v861
    %v870 = vsub.f32 %v838, %v862
    %v871 = vlaneseq
    %v872 = vand.u32 %v871, 127
    %vm873 = vcmp.lt.s32.totalorder %v872, 32
    %v874 = vsel %vm873, 1, 0
    %vm875 = vcmp.eq.s32.totalorder %v874, 1
    %v876 = vsel %vm875, %v863, 0.0
    %v877 = vsel %vm875, %v864, 0.0
    %v878 = vsel %vm875, %v865, 0.0
    %v879 = vsel %vm875, %v866, 0.0
    %v880 = vsel %vm875, %v867, 0.0
    %v881 = vsel %vm875, %v868, 0.0
    %v882 = vsel %vm875, %v869, 0.0
    %v883 = vsel %vm875, %v870, 0.0
    %v884 = vmul.f32 %v876, %v876
    %v885 = vmul.f32 %v877, %v877
    %v886 = vmul.f32 %v878, %v878
    %v887 = vmul.f32 %v879, %v879
    %v888 = vmul.f32 %v880, %v880
    %v889 = vmul.f32 %v881, %v881
    %v890 = vmul.f32 %v882, %v882
    %v891 = vmul.f32 %v883, %v883
    %892 = vadd.xlane.f32.xlu0 %v884
    %v893 = vpop.xlane.xlu0 %892
    %894 = vadd.xlane.f32.xlu0 %v885
    %v895 = vpop.xlane.xlu0 %894
    %896 = vadd.xlane.f32.xlu0 %v886
    %v897 = vpop.xlane.xlu0 %896
    %898 = vadd.xlane.f32.xlu0 %v887
    %v899 = vpop.xlane.xlu0 %898
    %900 = vadd.xlane.f32.xlu0 %v888
    %v901 = vpop.xlane.xlu0 %900
    %902 = vadd.xlane.f32.xlu0 %v889
    %v903 = vpop.xlane.xlu0 %902
    %904 = vadd.xlane.f32.xlu0 %v890
    %v905 = vpop.xlane.xlu0 %904
    %906 = vadd.xlane.f32.xlu0 %v891
    %v907 = vpop.xlane.xlu0 %906
    %v908 = vmul.f32 %v893, 0.03125
    %v909 = vmul.f32 %v895, 0.03125
    %v910 = vmul.f32 %v897, 0.03125
    %v911 = vmul.f32 %v899, 0.03125
    %v912 = vmul.f32 %v901, 0.03125
    %v913 = vmul.f32 %v903, 0.03125
    %v914 = vmul.f32 %v905, 0.03125
    %v915 = vmul.f32 %v907, 0.03125
    %v916 = vadd.f32 %v908, 1e-05
    %v917 = vadd.f32 %v909, 1e-05
    %v918 = vadd.f32 %v910, 1e-05
    %v919 = vadd.f32 %v911, 1e-05
    %v920 = vadd.f32 %v912, 1e-05
    %v921 = vadd.f32 %v913, 1e-05
    %v922 = vadd.f32 %v914, 1e-05
    %v923 = vadd.f32 %v915, 1e-05
    %v924 = vrsqrt.pop %v916
    %v925 = vrsqrt.pop %v917
    %v926 = vrsqrt.pop %v918
    %v927 = vrsqrt.pop %v919
    %v928 = vrsqrt.pop %v920
    %v929 = vrsqrt.pop %v921
    %v930 = vrsqrt.pop %v922
    %v931 = vrsqrt.pop %v923
    %v932 = vmul.f32 %v876, %v924
    %v933 = vmul.f32 %v877, %v925
    %v934 = vmul.f32 %v878, %v926
    %v935 = vmul.f32 %v879, %v927
    %v936 = vmul.f32 %v880, %v928
    %v937 = vmul.f32 %v881, %v929
    %v938 = vmul.f32 %v882, %v930
    %v939 = vmul.f32 %v883, %v931
    %v940 = vlaneseq
    %v941 = vshrl.u32 %v940, 7
    %v942 = vsub.s32 1, %v941
    %v943 = vrot.slane %v56, %v942
    %v944 = vmul.f32 %v932, %v943
    %v945 = vmul.f32 %v933, %v943
    %v946 = vmul.f32 %v934, %v943
    %v947 = vmul.f32 %v935, %v943
    %v948 = vmul.f32 %v936, %v943
    %v949 = vmul.f32 %v937, %v943
    %v950 = vmul.f32 %v938, %v943
    %v951 = vmul.f32 %v939, %v943
    %v952 = vlaneseq
    %v953 = vshrl.u32 %v952, 7
    %v954 = vsub.s32 2, %v953
    %v955 = vrot.slane %v56, %v954
    %v956 = vadd.f32 %v944, %v955
    %v957 = vadd.f32 %v945, %v955
    %v958 = vadd.f32 %v946, %v955
    %v959 = vadd.f32 %v947, %v955
    %v960 = vadd.f32 %v948, %v955
    %v961 = vadd.f32 %v949, %v955
    %v962 = vadd.f32 %v950, %v955
    %v963 = vadd.f32 %v951, %v955
    %v964 = vmax.f32 %v956, 0.0
    %v965 = vmax.f32 %v957, 0.0
    %v966 = vmax.f32 %v958, 0.0
    %v967 = vmax.f32 %v959, 0.0
    %v968 = vmax.f32 %v960, 0.0
    %v969 = vmax.f32 %v961, 0.0
    %v970 = vmax.f32 %v962, 0.0
    %v971 = vmax.f32 %v963, 0.0
    %v972 = vmax.f32 %v964, %v965
    %v973 = vrot.slane %v972, 4
    %v974 = vmax.f32 %v972, %v973
    %v975 = vrot.slane %v974, 2
    %v976 = vmax.f32 %v974, %v975
    %v977 = vrot.slane %v976, 1
    %v978 = vmax.f32 %v976, %v977
    %v979 = vmax.f32 %v966, %v967
    %v980 = vrot.slane %v979, 4
    %v981 = vmax.f32 %v979, %v980
    %v982 = vrot.slane %v981, 2
    %v983 = vmax.f32 %v981, %v982
    %v984 = vrot.slane %v983, 1
    %v985 = vmax.f32 %v983, %v984
    %v986 = vmax.f32 %v968, %v969
    %v987 = vrot.slane %v986, 4
    %v988 = vmax.f32 %v986, %v987
    %v989 = vrot.slane %v988, 2
    %v990 = vmax.f32 %v988, %v989
    %v991 = vrot.slane %v990, 1
    %v992 = vmax.f32 %v990, %v991
    %v993 = vmax.f32 %v970, %v971
    %v994 = vrot.slane %v993, 4
    %v995 = vmax.f32 %v993, %v994
    %v996 = vrot.slane %v995, 2
    %v997 = vmax.f32 %v995, %v996
    %v998 = vrot.slane %v997, 1
    %v999 = vmax.f32 %v997, %v998
    %vm1004 = vcmask 1041409
    %v1005 = vsel %vm1004, %v985, %v978
    %vm1006 = vcmask 1042434
    %v1007 = vsel %vm1006, %v992, %v1005
    %vm1008 = vcmask 1043459
    %v1009 = vsel %vm1008, %v999, %v1007
    %1011 = vst [vmem:[#allocation5] sm:$0xf] %v1009
    // Predicated region
    $region22: #{tpu_custom_call.1} parent=1 // pred_check
      _
    $region23: #{tpu_custom_call.1} parent=1 // pred_check_branch
      %1013 = sbr.rel (0) target = $region25
    $region24: #{tpu_custom_call.1} parent=1 // pred_region
      %s1015 = ssub.s32 64, 64
      %1016 = vsyncadd [#allocation4], %s1015
      %s1018 = sshll.u32 [#allocation5], 4
      %s1019 = int_to_ptr.vmem [resolvable:$true] %s1018
      %1021 = dma.vmem_to_hbm [thread:$0]  %s1019, 64, %s4, [#allocation4]
    $region25: #{tpu_custom_call.1} parent=1 // pred_fallthru
      _
    // Predicated region
    $region26: #{tpu_custom_call.1} parent=1 // pred_check
      _
    $region27: #{tpu_custom_call.1} parent=1 // pred_check_branch
      %1023 = sbr.rel (0) target = $region29
    $region28: #{tpu_custom_call.1} parent=1 // pred_region
      %1024 = dma.done [#allocation4], 64
    $region29: #{tpu_custom_call.1} parent=1 // pred_fallthru
      _
    %1025 = vsyncpa [#allocation3], 1
    %1026 = vsyncpa [#allocation4], 1

</llo_original>
